<compile_context>
chip_gen: v7x
topology: tpu7x:2x2x1
jax: 0.10.0
libtpu: 0.0.40
codegen_flags: <defaults>
</compile_context>

<pallas_src>
import math
import functools

import jax
import jax.numpy as jnp
from jax.experimental import pallas as pl
from jax.experimental.pallas import tpu as pltpu


# --------------------------- PE table (setup, plain JAX) --------------------------- #

def make_positional_encoding_table(d_model: int, max_len: int = 5000) -> jnp.ndarray:
    """Build the (1, max_len, d_model) sinusoidal PE buffer (same math as the module)."""
    position = jnp.arange(0, max_len, dtype=jnp.float32)[:, None]            # (L, 1)
    div_term = jnp.exp(
        jnp.arange(0, d_model, 2, dtype=jnp.float32) * -(math.log(10000.0) / d_model)
    )                                                                         # (D/2,)
    angles = position * div_term                                              # (L, D/2)
    pe = jnp.zeros((max_len, d_model), dtype=jnp.float32)
    pe = pe.at[:, 0::2].set(jnp.sin(angles))
    pe = pe.at[:, 1::2].set(jnp.cos(angles))
    return pe[None, :, :]                                                     # (1, L, D)


# --------------------------------- Pallas kernels ---------------------------------- #

def _pe_add_kernel(x_ref, pe_ref, o_ref):
    # x_ref: (bt, T), pe_ref: (1, T) -> broadcast add over the batch rows of the block.
    o_ref[...] = (x_ref[...] + pe_ref[...]).astype(o_ref.dtype)


def _pe_add_dropout_kernel(x_ref, pe_ref, bits_ref, o_ref, *, threshold, inv_keep):
    # Training-mode dropout: keep with prob (1-p), scale kept values by 1/(1-p).
    # Exact integer threshold test on raw uint32 bits: P(keep) = 1 - p.
    y = x_ref[...] + pe_ref[...]
    keep = bits_ref[...] >= jnp.uint32(threshold)
    o_ref[...] = jnp.where(keep, y * inv_keep, jnp.zeros_like(y)).astype(o_ref.dtype)


# ------------------------------------ wrapper --------------------------------------- #

def _choose_block(batch: int, feat: int, itemsize: int,
                  target_bytes: int = 2 * 1024 * 1024):
    """Pick a (bt, T) block for a (batch, feat) array: lane-dense T, dtype-aware sublanes."""
    lane = 128
    sub = {4: 8, 2: 16, 1: 32}.get(itemsize, 8)        # f32 / bf16 / int8-fp8 native sublanes
    if feat % lane == 0:
        t = min(feat, max(lane, (target_bytes // max(1, itemsize)) // lane * lane))
    else:
        # Rare fallback: full trailing dim (satisfies the BlockSpec rule, but masked stores).
        t = feat
    rows = max(1, target_bytes // max(1, t * itemsize))
    if rows >= batch:
        bt = batch                                      # full batch dim (always legal)
    elif rows >= sub:
        bt = (rows // sub) * sub                        # sublane-aligned batch block
    else:
        bt = min(batch, sub)
    return bt, t


def positional_encoding_forward(x, pe_table, *, dropout_p=0.1, training=False, rng_key=None):
    """x: (B, S, D).  pe_table: (1, max_len, D) with max_len >= S."""
    B, S, D = x.shape
    _, max_len, Dp = pe_table.shape
    assert Dp == D and max_len >= S

    dtype = x.dtype
    itemsize = jnp.dtype(dtype).itemsize
    F = S * D

    # Lane-dense flattening: (B, S, D) -> (B, S*D). Pure elementwise op with batch-only
    # broadcast, so the reshape is legal and PE reuse across batch blocks is preserved.
    x2 = x.reshape(B, F)
    pe2 = pe_table[:, :S, :].astype(dtype).reshape(1, F)

    bt, t = _choose_block(B, F, itemsize)
    grid = (pl.cdiv(F, t), pl.cdiv(B, bt))              # batch innermost -> PE tile resident

    x_spec = pl.BlockSpec((bt, t), lambda ti, bi: (bi, ti))
    pe_spec = pl.BlockSpec((1, t), lambda ti, bi: (0, ti))
    out_spec = pl.BlockSpec((bt, t), lambda ti, bi: (bi, ti))
    out_shape = jax.ShapeDtypeStruct((B, F), dtype)

    compiler_params = pltpu.CompilerParams(
        dimension_semantics=("parallel", "parallel"),   # no carry on either axis (megacore OK)
        vmem_limit_bytes=32 * 1024 * 1024,              # safe on v5e/v6e/v7x; blocks are ~2 MiB
    )

    if training and dropout_p > 0.0:
        if rng_key is None:
            rng_key = jax.random.PRNGKey(0)
        p = float(dropout_p)
        threshold = min(int(round(p * (2 ** 32))), 2 ** 32 - 1)
        # TODO(synk): on real hardware the dropout bits could come from pltpu.prng_random_bits
        # inside the kernel (saves one HBM input stream); the stateful TPU PRNG does not lower
        # in interpret mode, so the bits are generated host-side and streamed in instead.
        bits = jax.random.bits(rng_key, (B, F), dtype=jnp.uint32)
        kernel = functools.partial(
            _pe_add_dropout_kernel, threshold=threshold, inv_keep=1.0 / (1.0 - p)
        )
        grid_spec = pltpu.PrefetchScalarGridSpec(
            num_scalar_prefetch=0,
            grid=grid,
            in_specs=[x_spec, pe_spec,
                      pl.BlockSpec((bt, t), lambda ti, bi: (bi, ti))],   # bits
            out_specs=out_spec,
        )
        out2 = pl.pallas_call(
            kernel, grid_spec=grid_spec, out_shape=out_shape,
            compiler_params=compiler_params,
        )(x2, pe2, bits)
    else:
        grid_spec = pltpu.PrefetchScalarGridSpec(
            num_scalar_prefetch=0,
            grid=grid,
            in_specs=[x_spec, pe_spec],
            out_specs=out_spec,
        )
        out2 = pl.pallas_call(
            _pe_add_kernel, grid_spec=grid_spec, out_shape=out_shape,
            compiler_params=compiler_params,
        )(x2, pe2)

    return out2.reshape(B, S, D)


if __name__ == "__main__":
    d_model = 32
    batch = 2
    seq = 8
    max_len = 5000
    dropout_p = 0.1

    key = jax.random.PRNGKey(0)
    kx, kd = jax.random.split(key)
    x = jax.random.normal(kx, (batch, seq, d_model), dtype=jnp.float32)
    pe_table = make_positional_encoding_table(d_model, max_len)

    # ---- eval mode (dropout inactive), matches module.eval() semantics ----
    out = positional_encoding_forward(x, pe_table, dropout_p=dropout_p, training=False)
    out = jax.block_until_ready(out)

    ref = x + pe_table[:, :seq, :]
    assert out.shape == (batch, seq, d_model)
    assert jnp.allclose(out, ref, atol=1e-6), "eval-mode mismatch vs reference"

    # ---- training mode (dropout active): stochastic; sanity-check semantics ----
    out_train = positional_encoding_forward(
        x, pe_table, dropout_p=dropout_p, training=True, rng_key=kd)
    out_train = jax.block_until_ready(out_train)
    assert out_train.shape == (batch, seq, d_model)
    scaled = ref * (1.0 / (1.0 - dropout_p))
    ok = jnp.all((jnp.abs(out_train) < 1e-6) | (jnp.abs(out_train - scaled) < 1e-4))
    assert bool(ok), "training-mode values must be 0 or (x+pe)/(1-p)"

    print("KERNEL_OK")
</pallas_src>

<mosaic_0001>
module attributes {stable_mosaic.version = 11 : i64} {
  func.func @_pe_add_kernel(%arg0: i32, %arg1: i32, %arg2: memref<2x256xf32, #tpu.memory_space<vmem>>, %arg3: memref<1x256xf32, #tpu.memory_space<vmem>>, %arg4: memref<2x256xf32, #tpu.memory_space<vmem>>) attributes {dimension_semantics = [#tpu.dimension_semantics<parallel>, #tpu.dimension_semantics<parallel>], iteration_bounds = array<i64: 1, 1>, scalar_prefetch = 0 : i64, scratch_operands = 0 : i64, tpu.core_type = #tpu.core_type<tc>, window_params = [{transform_indices = @transform_0, window_bounds = array<i64: 2, 256>}, {transform_indices = @transform_1, window_bounds = array<i64: 1, 256>}, {transform_indices = @transform_2, window_bounds = array<i64: 2, 256>}]} {
    %c0 = arith.constant 0 : index
    %c0_0 = arith.constant 0 : index
    %0 = vector.load %arg2[%c0, %c0_0] : memref<2x256xf32, #tpu.memory_space<vmem>>, vector<2x256xf32>
    %c0_1 = arith.constant 0 : index
    %c0_2 = arith.constant 0 : index
    %1 = vector.load %arg3[%c0_1, %c0_2] : memref<1x256xf32, #tpu.memory_space<vmem>>, vector<1x256xf32>
    %2 = vector.broadcast %1 : vector<1x256xf32> to vector<2x256xf32>
    %3 = arith.addf %0, %2 : vector<2x256xf32>
    %c0_3 = arith.constant 0 : index
    %c0_4 = arith.constant 0 : index
    %4 = vector.load %arg4[%c0_3, %c0_4] : memref<2x256xf32, #tpu.memory_space<vmem>>, vector<2x256xf32>
    tpu.vector_store %arg4[%c0_3, %c0_4], %3 {strides = array<i32>} : memref<2x256xf32, #tpu.memory_space<vmem>>, vector<2x256xf32>,
    return
  }
  func.func @transform_0(%arg0: i32, %arg1: i32) -> (i32, i32) {
    %c0_i32 = arith.constant 0 : i32
    return %arg1, %arg0 : i32, i32
  }
  func.func @transform_1(%arg0: i32, %arg1: i32) -> (i32, i32) {
    %c0_i32 = arith.constant 0 : i32
    %c0_i32_0 = arith.constant 0 : i32
    return %c0_i32, %arg0 : i32, i32
  }
  func.func @transform_2(%arg0: i32, %arg1: i32) -> (i32, i32) {
    %c0_i32 = arith.constant 0 : i32
    return %arg1, %arg0 : i32, i32
  }
}

</mosaic_0001>

<llo_original>
// kernel: tpu_custom_call.1
$region0: #{tpu_custom_call.1}
  #allocation0 [shape = 'u32[]', space=smem, size = 0x4, offset = 0x4, fixed_abs, tag = 'smem constant byte address 0x4 - core index']
  #allocation1 [shape = 'u32[144,128]{1,0:T(1,128)}', space=vmem, size = 0x12000, scoped, tag = 'internal scratch']
  %s0 = inlined_call_operand.hbm [shape: f32[2,256], index: 0, kind: input, shape index: {}]
  %s1 = inlined_call_operand.vmem [shape: f32[1,256], index: 1, kind: input, shape index: {}]
  %s2 = inlined_call_operand.hbm [shape: f32[2,256], index: 2, kind: output, shape index: {}]
  %s3 = sld [smem:[#allocation0]]
  $region22: #{tpu_custom_call.1} parent=0
    _
  %s5 = ssub.s32 1, %s3
  %s6 = scalar_select 0, %s5, %s3
  $region1: #{tpu_custom_call.1} parent=0
    #allocation2 [shape = 'u8[2048]{0}', space=vmem, size = 0x800, scoped, tag = 'input window, operand 0, single buffered']
    #allocation3 [shape = 's32[1]{0}', space=sflag, size = 0x4, scoped, tag = 'scoped memory for tpu_custom_call.1']
    #allocation4 [shape = 's32[1]{0}', space=sflag, size = 0x4, scoped, tag = 'scoped memory for tpu_custom_call.1']
    #allocation5 [shape = 'u8[2048]{0}', space=vmem, size = 0x800, scoped, tag = 'output window, operand 0, single buffered']
    %7 = vsyncpa [#allocation3], 0
    %8 = vsyncpa [#allocation4], 0
    // Predicated region
    $region2: #{tpu_custom_call.1} parent=1 // pred_check
      _
    $region3: #{tpu_custom_call.1} parent=1 // pred_check_branch
      %10 = sbr.rel (0) target = $region5
    $region4: #{tpu_custom_call.1} parent=1 // pred_region
      %s12 = ssub.s32 64, 64
      %13 = vsyncadd [#allocation3], %s12
      %s15 = sshll.u32 [#allocation2], 4
      %s16 = int_to_ptr.vmem [resolvable:$true] %s15
      %18 = dma.hbm_to_vmem [thread:$0]  %s0, 64, %s16, [#allocation3]
    $region5: #{tpu_custom_call.1} parent=1 // pred_fallthru
      _
    // Predicated region
    $region6: #{tpu_custom_call.1} parent=1 // pred_check
      _
    $region7: #{tpu_custom_call.1} parent=1 // pred_check_branch
      %20 = sbr.rel (0) target = $region9
    $region8: #{tpu_custom_call.1} parent=1 // pred_region
      _
    $region9: #{tpu_custom_call.1} parent=1 // pred_fallthru
      _
    // Predicated region
    $region10: #{tpu_custom_call.1} parent=1 // pred_check
      _
    $region11: #{tpu_custom_call.1} parent=1 // pred_check_branch
      %22 = sbr.rel (0) target = $region13
    $region12: #{tpu_custom_call.1} parent=1 // pred_region
      %23 = dma.done [#allocation3], 64
    $region13: #{tpu_custom_call.1} parent=1 // pred_fallthru
      _
    %v24 = vld [vmem:[#allocation2] sm:$0xf]
    %v25 = vld [vmem:[%s1] sm:$0x3]
    %v27 = vlaneseq
    %v28 = vshrl.u32 %v27, 7
    %v29 = vsub.s32 0, %v28
    %v30 = vrot.slane %v25, %v29
    %v31 = vlaneseq
    %v32 = vshrl.u32 %v31, 7
    %v33 = vsub.s32 1, %v32
    %v34 = vrot.slane %v25, %v33
    %v35 = vcombine.low %v30, %v34
    %v37 = vunpack.c.l.s4 1983009808
    %v38 = vunpack.c.0.s8 %v37
    %v39 = vlaneseq
    %v40 = vshrl.u32 %v39, 7
    %v41 = vsub.s32 %v38, %v40
    %v42 = vrot.slane %v35, %v41
    %v44 = vadd.f32 %v24, %v42
    %45 = vst [vmem:[#allocation5] sm:$0xf] %v44
    // Predicated region
    $region14: #{tpu_custom_call.1} parent=1 // pred_check
      _
    $region15: #{tpu_custom_call.1} parent=1 // pred_check_branch
      %47 = sbr.rel (0) target = $region17
    $region16: #{tpu_custom_call.1} parent=1 // pred_region
      %s49 = ssub.s32 64, 64
      %50 = vsyncadd [#allocation4], %s49
      %s52 = sshll.u32 [#allocation5], 4
      %s53 = int_to_ptr.vmem [resolvable:$true] %s52
      %55 = dma.vmem_to_hbm [thread:$0]  %s53, 64, %s2, [#allocation4]
    $region17: #{tpu_custom_call.1} parent=1 // pred_fallthru
      _
    // Predicated region
    $region18: #{tpu_custom_call.1} parent=1 // pred_check
      _
    $region19: #{tpu_custom_call.1} parent=1 // pred_check_branch
      %57 = sbr.rel (0) target = $region21
    $region20: #{tpu_custom_call.1} parent=1 // pred_region
      %58 = dma.done [#allocation4], 64
    $region21: #{tpu_custom_call.1} parent=1 // pred_fallthru
      _
    %59 = vsyncpa [#allocation3], 1
    %60 = vsyncpa [#allocation4], 1

</llo_original>
